<compile_context>
chip_gen: v6e
topology: v6e:2x2x1
jax: 0.10.0
libtpu: 0.0.40
codegen_flags: <defaults>
</compile_context>

<pallas_src>
import jax
import jax.numpy as jnp
from jax.experimental import pallas as pl
from jax.experimental.pallas import tpu as pltpu

_SUBLANES = 8          # f32 sublane count
_MAX_BATCH_TILE = 512  # ~85% of HBM roofline vs ~60% at 128-row tiles


def _round_up(n, m):
    return ((n + m - 1) // m) * m


def linear_kernel(x_ref, w_ref, b_ref, o_ref):
    """o = x @ w + b on one (tb, H) row tile.

    x_ref: (tb, H)      native dtype, straight to the MXU
    w_ref: (H, c_pad)   native dtype, lane-padded, resident across the grid
    b_ref: (1, c_pad)   f32, resident
    o_ref: (tb, c_out)  c_out <= c_pad (c_out < c_pad => small masked vst)
    """
    acc = jnp.dot(x_ref[...], w_ref[...], preferred_element_type=jnp.float32)
    acc = acc + b_ref[...]                      # f32 bias add (v5e-safe)
    o_ref[...] = acc[:, : o_ref.shape[1]].astype(o_ref.dtype)


def prepare_classifier_params(weight, bias, compute_dtype=None):
    """One-time parameter prep (NOT the hot path).

    weight: (C, H) PyTorch nn.Linear layout -> transposed, lane-padded (H, c_pad)
    bias:   (C,)                            -> f32, padded (1, c_pad)
    compute_dtype: dtype the MXU operands should use (match x's dtype).
    """
    C, H = weight.shape
    compute_dtype = weight.dtype if compute_dtype is None else compute_dtype
    # v6e/v7x MXUs are 256-wide: use 256-lane padding only when C is large
    # enough that the extra lanes are not pure waste (C=4 stays at 128).
    lanes = 256 if C > 128 else 128
    c_pad = _round_up(C, lanes)
    w_t = (
        jnp.zeros((H, c_pad), compute_dtype)
        .at[:, :C]
        .set(weight.T.astype(compute_dtype))
    )
    b2 = jnp.zeros((1, c_pad), jnp.float32).at[0, :C].set(bias.astype(jnp.float32))
    return w_t, b2


def _pallas_linear(x, w_prepared, b_prepared, out_cols, tb, *, single_buffer_resident):
    B, H = x.shape
    c_pad = w_prepared.shape[1]
    num_tiles = pl.cdiv(B, tb)

    x_itemsize = jnp.dtype(x.dtype).itemsize
    w_itemsize = jnp.dtype(w_prepared.dtype).itemsize
    w_bufs = 1 if single_buffer_resident else 2

    # Footprint-derived VMEM budget (v5e scoped default is only 16 MiB);
    # capped at 64 MiB so it never exceeds v7x physical VMEM.
    vmem_needed = (
        2 * tb * H * x_itemsize                 # x tile, double-buffered
        + 2 * tb * out_cols * x_itemsize        # out tile, double-buffered
        + w_bufs * H * c_pad * w_itemsize       # resident weight
        + w_bufs * c_pad * 4                    # resident bias (f32)
    )
    vmem_limit = int(min(64 * 2**20, max(32 * 2**20, 2 * vmem_needed)))

    if single_buffer_resident:
        # Block index of weight/bias never changes -> double-buffering only
        # doubles resident VMEM; single-buffer them.
        w_spec = pl.BlockSpec((H, c_pad), lambda i: (0, 0),
                              pipeline_mode=pl.Buffered(1))
        b_spec = pl.BlockSpec((1, c_pad), lambda i: (0, 0),
                              pipeline_mode=pl.Buffered(1))
    else:
        w_spec = pl.BlockSpec((H, c_pad), lambda i: (0, 0))
        b_spec = pl.BlockSpec((1, c_pad), lambda i: (0, 0))

    cost = pl.CostEstimate(
        flops=2 * B * H * c_pad,
        transcendentals=0,
        bytes_accessed=(B * H + B * out_cols) * x_itemsize
        + H * c_pad * w_itemsize
        + c_pad * 4,
    )

    return pl.pallas_call(
        linear_kernel,
        out_shape=jax.ShapeDtypeStruct((B, out_cols), x.dtype),
        grid=(num_tiles,),
        in_specs=[
            pl.BlockSpec((tb, H), lambda i: (i, 0)),   # streamed row tile of x
            w_spec,                                    # resident weight
            b_spec,                                    # resident bias
        ],
        out_specs=pl.BlockSpec((tb, out_cols), lambda i: (i, 0)),
        compiler_params=pltpu.CompilerParams(
            dimension_semantics=("parallel",),         # 2-TC sharding on v7x
            vmem_limit_bytes=vmem_limit,
        ),
        cost_estimate=cost,
    )(x, w_prepared, b_prepared)


def bert_classifier_forward(x, w_prepared, b_prepared, num_classes, *,
                            force_pallas=False):
    """BertModel.forward equivalent: classifierbert(x) = x @ W^T + b.

    x: (B, H) -> (B, num_classes) in x.dtype.
    input_ids / attention_mask of the PyTorch forward are unused and omitted.
    """
    B, H = x.shape
    c_pad = w_prepared.shape[1]

    # Tiny problems: pallas_call launch + one grid step dwarfs the compute;
    # plain XLA is faster.  Route through the kernel only above a threshold
    # (or when forced, e.g. for testing).
    if not force_pallas and B * H * c_pad < (1 << 20):
        out = jnp.dot(x, w_prepared[:, :num_classes],
                      preferred_element_type=jnp.float32)
        return (out + b_prepared[0, :num_classes]).astype(x.dtype)

    # Output width: lane-dense padded writeback only when input traffic
    # dominates (large H); otherwise write the true num_classes columns
    # (small masked store, no post-kernel slice copy).
    out_cols = c_pad if H >= 4 * c_pad else num_classes

    # Batch tile: sublane granularity for small B, 512 rows for large B;
    # capped so the parallel axis has >=2 steps once the batch is big enough
    # for v7x's two TensorCores.
    tb = min(_MAX_BATCH_TILE, _round_up(B, _SUBLANES))
    if pl.cdiv(B, tb) < 2 and B > 4 * _SUBLANES:
        tb = _round_up(pl.cdiv(B, 2), _SUBLANES)

    try:
        out = _pallas_linear(x, w_prepared, b_prepared, out_cols, tb,
                             single_buffer_resident=True)
    except Exception:  # pragma: no cover - jax w/o pipeline_mode on pallas_call
        out = _pallas_linear(x, w_prepared, b_prepared, out_cols, tb,
                             single_buffer_resident=False)

    return out if out_cols == num_classes else out[:, :num_classes]


if __name__ == "__main__":
    # Small shapes consistent with the module's forward:
    # hidden (cur_dim) = 32, num_classes = 4, batch = 2.
    batch, hidden, num_classes = 2, 32, 4

    key = jax.random.PRNGKey(0)
    kx, kw, kb = jax.random.split(key, 3)

    # Deterministic parameter init (nn.Linear-style uniform bound).
    bound = 1.0 / jnp.sqrt(jnp.float32(hidden))
    weight = jax.random.uniform(
        kw, (num_classes, hidden), jnp.float32, minval=-bound, maxval=bound
    )
    bias = jax.random.uniform(
        kb, (num_classes,), jnp.float32, minval=-bound, maxval=bound
    )

    x = jax.random.normal(kx, (batch, hidden), jnp.float32)

    # input_ids / attention_mask are accepted by the PyTorch forward but unused.
    w_p, b_p = prepare_classifier_params(weight, bias, compute_dtype=x.dtype)

    # force_pallas=True: at these toy shapes the default dispatch would route
    # to plain XLA (per perf review); force the kernel so it is exercised.
    out = bert_classifier_forward(x, w_p, b_p, num_classes, force_pallas=True)
    out = jax.block_until_ready(out)

    # Reference check in plain JAX.
    ref = x @ weight.T + bias
    assert out.shape == (batch, num_classes)
    assert jnp.allclose(out, ref, atol=1e-5, rtol=1e-5)

    print("KERNEL_OK")
</pallas_src>

<mosaic_0001>
module attributes {stable_mosaic.version = 11 : i64} {
  func.func @linear_kernel(%arg0: i32, %arg1: memref<8x32xf32, #tpu.memory_space<vmem>>, %arg2: memref<32x128xf32, #tpu.memory_space<vmem>>, %arg3: memref<1x128xf32, #tpu.memory_space<vmem>>, %arg4: memref<8x4xf32, #tpu.memory_space<vmem>>) attributes {dimension_semantics = [#tpu.dimension_semantics<parallel>], iteration_bounds = array<i64: 1>, scalar_prefetch = 0 : i64, scratch_operands = 0 : i64, tpu.core_type = #tpu.core_type<tc>, window_params = [{transform_indices = @transform_0, window_bounds = array<i64: 8, 32>}, {pipeline_mode = #tpu.pipeline_mode<synchronous>, transform_indices = @transform_1, window_bounds = array<i64: 32, 128>}, {pipeline_mode = #tpu.pipeline_mode<synchronous>, transform_indices = @transform_2, window_bounds = array<i64: 1, 128>}, {transform_indices = @transform_3, window_bounds = array<i64: 8, 4>}]} {
    %c0 = arith.constant 0 : index
    %c0_0 = arith.constant 0 : index
    %0 = vector.load %arg1[%c0, %c0_0] : memref<8x32xf32, #tpu.memory_space<vmem>>, vector<8x32xf32>
    %c0_1 = arith.constant 0 : index
    %c0_2 = arith.constant 0 : index
    %1 = vector.load %arg2[%c0_1, %c0_2] : memref<32x128xf32, #tpu.memory_space<vmem>>, vector<32x128xf32>
    %cst = arith.constant dense<0.000000e+00> : vector<8x128xf32>
    %2 = tpu.matmul %0, %1, %cst {dimension_numbers = #tpu.dot_dimension_numbers<[1], [0], [0], [1], [0, 0, 1, 1], [], []>} : vector<8x32xf32>, vector<32x128xf32>, vector<8x128xf32> -> vector<8x128xf32>
    %c0_3 = arith.constant 0 : index
    %c0_4 = arith.constant 0 : index
    %3 = vector.load %arg3[%c0_3, %c0_4] : memref<1x128xf32, #tpu.memory_space<vmem>>, vector<1x128xf32>
    %4 = vector.broadcast %3 : vector<1x128xf32> to vector<8x128xf32>
    %5 = arith.addf %2, %4 : vector<8x128xf32>
    %6 = vector.extract_strided_slice %5 {offsets = [0, 0], sizes = [8, 4], strides = [1, 1]} : vector<8x128xf32> to vector<8x4xf32>
    %c0_5 = arith.constant 0 : index
    %c0_6 = arith.constant 0 : index
    %7 = vector.load %arg4[%c0_5, %c0_6] : memref<8x4xf32, #tpu.memory_space<vmem>>, vector<8x4xf32>
    tpu.vector_store %arg4[%c0_5, %c0_6], %6 {strides = array<i32>} : memref<8x4xf32, #tpu.memory_space<vmem>>, vector<8x4xf32>,
    return
  }
  func.func @transform_0(%arg0: i32) -> (i32, i32) {
    %c0_i32 = arith.constant 0 : i32
    %c0_i32_0 = arith.constant 0 : i32
    return %arg0, %c0_i32 : i32, i32
  }
  func.func @transform_1(%arg0: i32) -> (i32, i32) {
    %c0_i32 = arith.constant 0 : i32
    %c0_i32_0 = arith.constant 0 : i32
    %c0_i32_1 = arith.constant 0 : i32
    return %c0_i32, %c0_i32_0 : i32, i32
  }
  func.func @transform_2(%arg0: i32) -> (i32, i32) {
    %c0_i32 = arith.constant 0 : i32
    %c0_i32_0 = arith.constant 0 : i32
    %c0_i32_1 = arith.constant 0 : i32
    return %c0_i32, %c0_i32_0 : i32, i32
  }
  func.func @transform_3(%arg0: i32) -> (i32, i32) {
    %c0_i32 = arith.constant 0 : i32
    %c0_i32_0 = arith.constant 0 : i32
    return %arg0, %c0_i32 : i32, i32
  }
}

module attributes {stable_mosaic.version = 11 : i64} {
  func.func @linear_kernel(%arg0: i32, %arg1: memref<8x32xf32, #tpu.memory_space<vmem>>, %arg2: memref<32x128xf32, #tpu.memory_space<vmem>>, %arg3: memref<1x128xf32, #tpu.memory_space<vmem>>, %arg4: memref<8x4xf32, #tpu.memory_space<vmem>>) attributes {dimension_semantics = [#tpu.dimension_semantics<parallel>], iteration_bounds = array<i64: 1>, scalar_prefetch = 0 : i64, scratch_operands = 0 : i64, tpu.core_type = #tpu.core_type<tc>, window_params = [{transform_indices = @transform_0, window_bounds = array<i64: 8, 32>}, {pipeline_mode = #tpu.pipeline_mode<synchronous>, transform_indices = @transform_1, window_bounds = array<i64: 32, 128>}, {pipeline_mode = #tpu.pipeline_mode<synchronous>, transform_indices = @transform_2, window_bounds = array<i64: 1, 128>}, {transform_indices = @transform_3, window_bounds = array<i64: 8, 4>}]} {
    %c0 = arith.constant 0 : index
    %c0_0 = arith.constant 0 : index
    %0 = vector.load %arg1[%c0, %c0_0] : memref<8x32xf32, #tpu.memory_space<vmem>>, vector<8x32xf32>
    %c0_1 = arith.constant 0 : index
    %c0_2 = arith.constant 0 : index
    %1 = vector.load %arg2[%c0_1, %c0_2] : memref<32x128xf32, #tpu.memory_space<vmem>>, vector<32x128xf32>
    %cst = arith.constant dense<0.000000e+00> : vector<8x128xf32>
    %2 = tpu.matmul %0, %1, %cst {dimension_numbers = #tpu.dot_dimension_numbers<[1], [0], [0], [1], [0, 0, 1, 1], [], []>} : vector<8x32xf32>, vector<32x128xf32>, vector<8x128xf32> -> vector<8x128xf32>
    %c0_3 = arith.constant 0 : index
    %c0_4 = arith.constant 0 : index
    %3 = vector.load %arg3[%c0_3, %c0_4] : memref<1x128xf32, #tpu.memory_space<vmem>>, vector<1x128xf32>
    %4 = vector.broadcast %3 : vector<1x128xf32> to vector<8x128xf32>
    %5 = arith.addf %2, %4 : vector<8x128xf32>
    %6 = vector.extract_strided_slice %5 {offsets = [0, 0], sizes = [8, 4], strides = [1, 1]} : vector<8x128xf32> to vector<8x4xf32>
    %c0_5 = arith.constant 0 : index
    %c0_6 = arith.constant 0 : index
    %7 = vector.load %arg4[%c0_5, %c0_6] : memref<8x4xf32, #tpu.memory_space<vmem>>, vector<8x4xf32>
    tpu.vector_store %arg4[%c0_5, %c0_6], %6 {strides = array<i32>} : memref<8x4xf32, #tpu.memory_space<vmem>>, vector<8x4xf32>,
    return
  }
  func.func @transform_0(%arg0: i32) -> (i32, i32) {
    %c0_i32 = arith.constant 0 : i32
    %c0_i32_0 = arith.constant 0 : i32
    return %arg0, %c0_i32 : i32, i32
  }
  func.func @transform_1(%arg0: i32) -> (i32, i32) {
    %c0_i32 = arith.constant 0 : i32
    %c0_i32_0 = arith.constant 0 : i32
    %c0_i32_1 = arith.constant 0 : i32
    return %c0_i32, %c0_i32_0 : i32, i32
  }
  func.func @transform_2(%arg0: i32) -> (i32, i32) {
    %c0_i32 = arith.constant 0 : i32
    %c0_i32_0 = arith.constant 0 : i32
    %c0_i32_1 = arith.constant 0 : i32
    return %c0_i32, %c0_i32_0 : i32, i32
  }
  func.func @transform_3(%arg0: i32) -> (i32, i32) {
    %c0_i32 = arith.constant 0 : i32
    %c0_i32_0 = arith.constant 0 : i32
    return %arg0, %c0_i32 : i32, i32
  }
}

</mosaic_0001>

<llo_original>
// kernel: tpu_custom_call.1
$region0: #{tpu_custom_call.1}
  #allocation0 [shape = 'u32[]', space=smem, size = 0x4, offset = 0x4, fixed_abs, tag = 'smem constant byte address 0x4 - core index']
  #allocation1 [shape = 'u32[144,128]{1,0:T(1,128)}', space=vmem, size = 0x12000, scoped, tag = 'internal scratch']
  %s0 = inlined_call_operand.hbm [shape: f32[2,32], index: 0, kind: input, shape index: {}]
  %s1 = inlined_call_operand.hbm [shape: f32[32,128], index: 1, kind: input, shape index: {}]
  %s2 = inlined_call_operand.vmem [shape: f32[1,128], index: 2, kind: input, shape index: {}]
  %s3 = inlined_call_operand.hbm [shape: f32[2,4], index: 3, kind: output, shape index: {}]
  %s4 = sld [smem:[#allocation0]]
  $region30: #{tpu_custom_call.1} parent=0
    _
  %s6 = ssub.s32 1, %s4
  %s7 = scalar_select 0, %s6, %s4
  $region1: #{tpu_custom_call.1} parent=0
    #allocation2 [shape = 'u8[4096]{0}', space=vmem, size = 0x1000, scoped, tag = 'input window, operand 0, single buffered']
    #allocation3 [shape = 's32[1]{0}', space=sflag, size = 0x4, scoped, tag = 'scoped memory for tpu_custom_call.1']
    #allocation4 [shape = 's32[1]{0}', space=sflag, size = 0x4, scoped, tag = 'scoped memory for tpu_custom_call.1']
    #allocation5 [shape = 'u8[16384]{0}', space=vmem, size = 0x4000, scoped, tag = 'input window, operand 1, single buffered']
    #allocation6 [shape = 's32[1]{0}', space=sflag, size = 0x4, scoped, tag = 'scoped memory for tpu_custom_call.1']
    #allocation7 [shape = 'u8[4096]{0}', space=vmem, size = 0x1000, scoped, tag = 'output window, operand 0, single buffered']
    %8 = vsyncpa [#allocation3], 0
    %9 = vsyncpa [#allocation6], 0
    %10 = vsyncpa [#allocation4], 0
    // Predicated region
    $region2: #{tpu_custom_call.1} parent=1 // pred_check
      _
    $region3: #{tpu_custom_call.1} parent=1 // pred_check_branch
      %12 = sbr.rel (0) target = $region5
    $region4: #{tpu_custom_call.1} parent=1 // pred_region
      %s14 = ssub.s32 128, 32
      %15 = vsyncadd [#allocation3], %s14
      %s16 = sshll.u32 [#allocation2], 4
      %s17 = int_to_ptr.vmem [resolvable:$true] %s16
      %22 = dma.hbm_to_vmem [thread:$0]  %s0, 32, %s17, [#allocation3], 32, 32, 2
    $region5: #{tpu_custom_call.1} parent=1 // pred_fallthru
      _
    // Predicated region
    $region6: #{tpu_custom_call.1} parent=1 // pred_check
      _
    $region7: #{tpu_custom_call.1} parent=1 // pred_check_branch
      %24 = sbr.rel (0) target = $region9
    $region8: #{tpu_custom_call.1} parent=1 // pred_region
      %s26 = ssub.s32 512, 512
      %27 = vsyncadd [#allocation6], %s26
      %s28 = sshll.u32 [#allocation5], 4
      %s29 = int_to_ptr.vmem [resolvable:$true] %s28
      %34 = dma.hbm_to_vmem [thread:$0]  %s1, 512, %s29, [#allocation6], 128, 128, 8
    $region9: #{tpu_custom_call.1} parent=1 // pred_fallthru
      _
    // Predicated region
    $region10: #{tpu_custom_call.1} parent=1 // pred_check
      _
    $region11: #{tpu_custom_call.1} parent=1 // pred_check_branch
      %36 = sbr.rel (0) target = $region13
    $region12: #{tpu_custom_call.1} parent=1 // pred_region
      _
    $region13: #{tpu_custom_call.1} parent=1 // pred_fallthru
      _
    // Predicated region
    $region14: #{tpu_custom_call.1} parent=1 // pred_check
      _
    $region15: #{tpu_custom_call.1} parent=1 // pred_check_branch
      %38 = sbr.rel (0) target = $region17
    $region16: #{tpu_custom_call.1} parent=1 // pred_region
      %39 = dma.done [#allocation3], 128
    $region17: #{tpu_custom_call.1} parent=1 // pred_fallthru
      _
    // Predicated region
    $region18: #{tpu_custom_call.1} parent=1 // pred_check
      _
    $region19: #{tpu_custom_call.1} parent=1 // pred_check_branch
      %41 = sbr.rel (0) target = $region21
    $region20: #{tpu_custom_call.1} parent=1 // pred_region
      %42 = dma.done [#allocation6], 512
    $region21: #{tpu_custom_call.1} parent=1 // pred_fallthru
      _
    %v43 = vld [vmem:[#allocation2] sm:$0xff]
    %v44 = vld [vmem:[#allocation5] sm:$0xff]
    %v45 = vld [vmem:[#allocation5 + $0x8] sm:$0xff]
    %v46 = vld [vmem:[#allocation5 + $0x10] sm:$0xff]
    %v47 = vld [vmem:[#allocation5 + $0x18] sm:$0xff]
    %v48 = vld [vmem:[%s2] sm:$0x1]
    %v50 = vlaneseq
    %v51 = vshrl.u32 %v50, 7
    %v52 = vsub.s32 0, %v51
    %v53 = vrot.slane %v48, %v52
    %vm55 = vcmask 261120
    %v57 = vsel %vm55, %v43, 0
    %59 = vmatprep.subr.mxu0 0.0
    %60 = vmatpush1.msra.mxu0 0.0
    %61 = vmatprep.subr.mxu0 0.0
    %62 = vmatpush1.msra.mxu0 0.0
    %63 = vmatprep.subr.mxu0 0.0
    %64 = vmatpush1.msra.mxu0 0.0
    %65 = vmatprep.subr.mxu0 0.0
    %66 = vmatpush1.msra.mxu0 0.0
    %67 = vmatprep.subr.mxu0 0.0
    %68 = vmatpush1.msra.mxu0 0.0
    %69 = vmatprep.subr.mxu0 0.0
    %70 = vmatpush1.msra.mxu0 0.0
    %71 = vmatprep.subr.mxu0 0.0
    %72 = vmatpush1.msra.mxu0 0.0
    %73 = vmatprep.subr.mxu0 0.0
    %74 = vmatpush1.msra.mxu0 0.0
    %75 = vmatprep.subr.mxu0 0.0
    %76 = vmatpush1.msra.mxu0 0.0
    %77 = vmatprep.subr.mxu0 0.0
    %78 = vmatpush1.msra.mxu0 0.0
    %79 = vmatprep.subr.mxu0 0.0
    %80 = vmatpush1.msra.mxu0 0.0
    %81 = vmatprep.subr.mxu0 0.0
    %82 = vmatpush1.msra.mxu0 0.0
    %83 = vmatprep.subr.mxu0 0.0
    %84 = vmatpush1.msra.mxu0 %v47
    %85 = vmatprep.subr.mxu0 0.0
    %86 = vmatpush1.msra.mxu0 %v46
    %87 = vmatprep.subr.mxu0 0.0
    %88 = vmatpush1.msra.mxu0 %v45
    %89 = vmatprep.subr.mxu0 0.0
    %90 = vmatpush1.msra.mxu0 %v44
    %91 = vmatprep.subr.mxu0 0.0
    %92 = vmatpush2.msra.mxu0 0.0
    %93 = vmatprep.subr.mxu0 0.0
    %94 = vmatpush2.msra.mxu0 0.0
    %95 = vmatprep.subr.mxu0 0.0
    %96 = vmatpush2.msra.mxu0 0.0
    %97 = vmatprep.subr.mxu0 0.0
    %98 = vmatpush2.msra.mxu0 0.0
    %99 = vmatprep.subr.mxu0 0.0
    %100 = vmatpush2.msra.mxu0 0.0
    %101 = vmatprep.subr.mxu0 0.0
    %102 = vmatpush2.msra.mxu0 0.0
    %103 = vmatprep.subr.mxu0 0.0
    %104 = vmatpush2.msra.mxu0 0.0
    %105 = vmatprep.subr.mxu0 0.0
    %106 = vmatpush2.msra.mxu0 0.0
    %107 = vmatprep.subr.mxu0 0.0
    %108 = vmatpush2.msra.mxu0 0.0
    %109 = vmatprep.subr.mxu0 0.0
    %110 = vmatpush2.msra.mxu0 0.0
    %111 = vmatprep.subr.mxu0 0.0
    %112 = vmatpush2.msra.mxu0 0.0
    %113 = vmatprep.subr.mxu0 0.0
    %114 = vmatpush2.msra.mxu0 0.0
    %115 = vmatprep.subr.mxu0 0.0
    %116 = vmatpush2.msra.mxu0 0.0
    %117 = vmatprep.subr.mxu0 0.0
    %118 = vmatpush2.msra.mxu0 0.0
    %119 = vmatprep.subr.mxu0 0.0
    %120 = vmatpush2.msra.mxu0 0.0
    %121 = vmatprep.subr.mxu0 0.0
    %122 = vmatpush2.msra.mxu0 0.0
    %123 = vmatprep.mubr.f32.mxu0 0.0
    %124 = vmatmul.mubr.f32.gmra.mxu0 %v57
    %v125 = vpop.f32.mrf.mxu0
    %v126 = vadd.f32 %v53, %v125
    %v127 = vpop.f32.mrf.mxu0
    %128 = vdwg.mxu0
    %vm129 = vcmask 31744
    %130 = vst.msk [vmem:[#allocation7] sm:$0xff] %vm129, %v126
    // Predicated region
    $region22: #{tpu_custom_call.1} parent=1 // pred_check
      _
    $region23: #{tpu_custom_call.1} parent=1 // pred_check_branch
      %132 = sbr.rel (0) target = $region25
    $region24: #{tpu_custom_call.1} parent=1 // pred_region
      %s134 = ssub.s32 128, 32
      %135 = vsyncadd [#allocation4], %s134
      %s136 = sshll.u32 [#allocation7], 4
      %s137 = int_to_ptr.vmem [resolvable:$true] %s136
      %142 = dma.vmem_to_hbm [thread:$0]  %s137, 32, %s3, [#allocation4], 32, 32, 2
    $region25: #{tpu_custom_call.1} parent=1 // pred_fallthru
      _
    // Predicated region
    $region26: #{tpu_custom_call.1} parent=1 // pred_check
      _
    $region27: #{tpu_custom_call.1} parent=1 // pred_check_branch
      %144 = sbr.rel (0) target = $region29
    $region28: #{tpu_custom_call.1} parent=1 // pred_region
      %145 = dma.done [#allocation4], 128
    $region29: #{tpu_custom_call.1} parent=1 // pred_fallthru
      _
    %146 = vsyncpa [#allocation3], 1
    %147 = vsyncpa [#allocation6], 1
    %148 = vsyncpa [#allocation4], 1

// kernel: tpu_custom_call.1
$region0: #{tpu_custom_call.1}
  #allocation0 [shape = 'u32[]', space=smem, size = 0x4, offset = 0x4, fixed_abs, tag = 'smem constant byte address 0x4 - core index']
  #allocation1 [shape = 'u32[144,128]{1,0:T(1,128)}', space=vmem, size = 0x12000, scoped, tag = 'internal scratch']
  %s0 = inlined_call_operand.hbm [shape: f32[2,32], index: 0, kind: input, shape index: {}]
  %s1 = inlined_call_operand.hbm [shape: f32[32,128], index: 1, kind: input, shape index: {}]
  %s2 = inlined_call_operand.vmem [shape: f32[1,128], index: 2, kind: input, shape index: {}]
  %s3 = inlined_call_operand.hbm [shape: f32[2,4], index: 3, kind: output, shape index: {}]
  %s4 = sld [smem:[#allocation0]]
  $region30: #{tpu_custom_call.1} parent=0
    _
  %s6 = ssub.s32 1, %s4
  %s7 = scalar_select 0, %s6, %s4
  $region1: #{tpu_custom_call.1} parent=0
    #allocation2 [shape = 'u8[4096]{0}', space=vmem, size = 0x1000, scoped, tag = 'input window, operand 0, single buffered']
    #allocation3 [shape = 's32[1]{0}', space=sflag, size = 0x4, scoped, tag = 'scoped memory for tpu_custom_call.1']
    #allocation4 [shape = 's32[1]{0}', space=sflag, size = 0x4, scoped, tag = 'scoped memory for tpu_custom_call.1']
    #allocation5 [shape = 'u8[16384]{0}', space=vmem, size = 0x4000, scoped, tag = 'input window, operand 1, single buffered']
    #allocation6 [shape = 's32[1]{0}', space=sflag, size = 0x4, scoped, tag = 'scoped memory for tpu_custom_call.1']
    #allocation7 [shape = 'u8[4096]{0}', space=vmem, size = 0x1000, scoped, tag = 'output window, operand 0, single buffered']
    %8 = vsyncpa [#allocation3], 0
    %9 = vsyncpa [#allocation6], 0
    %10 = vsyncpa [#allocation4], 0
    // Predicated region
    $region2: #{tpu_custom_call.1} parent=1 // pred_check
      _
    $region3: #{tpu_custom_call.1} parent=1 // pred_check_branch
      %12 = sbr.rel (0) target = $region5
    $region4: #{tpu_custom_call.1} parent=1 // pred_region
      %s14 = ssub.s32 128, 32
      %15 = vsyncadd [#allocation3], %s14
      %s16 = sshll.u32 [#allocation2], 4
      %s17 = int_to_ptr.vmem [resolvable:$true] %s16
      %22 = dma.hbm_to_vmem [thread:$0]  %s0, 32, %s17, [#allocation3], 32, 32, 2
    $region5: #{tpu_custom_call.1} parent=1 // pred_fallthru
      _
    // Predicated region
    $region6: #{tpu_custom_call.1} parent=1 // pred_check
      _
    $region7: #{tpu_custom_call.1} parent=1 // pred_check_branch
      %24 = sbr.rel (0) target = $region9
    $region8: #{tpu_custom_call.1} parent=1 // pred_region
      %s26 = ssub.s32 512, 512
      %27 = vsyncadd [#allocation6], %s26
      %s28 = sshll.u32 [#allocation5], 4
      %s29 = int_to_ptr.vmem [resolvable:$true] %s28
      %34 = dma.hbm_to_vmem [thread:$0]  %s1, 512, %s29, [#allocation6], 128, 128, 8
    $region9: #{tpu_custom_call.1} parent=1 // pred_fallthru
      _
    // Predicated region
    $region10: #{tpu_custom_call.1} parent=1 // pred_check
      _
    $region11: #{tpu_custom_call.1} parent=1 // pred_check_branch
      %36 = sbr.rel (0) target = $region13
    $region12: #{tpu_custom_call.1} parent=1 // pred_region
      _
    $region13: #{tpu_custom_call.1} parent=1 // pred_fallthru
      _
    // Predicated region
    $region14: #{tpu_custom_call.1} parent=1 // pred_check
      _
    $region15: #{tpu_custom_call.1} parent=1 // pred_check_branch
      %38 = sbr.rel (0) target = $region17
    $region16: #{tpu_custom_call.1} parent=1 // pred_region
      %39 = dma.done [#allocation3], 128
    $region17: #{tpu_custom_call.1} parent=1 // pred_fallthru
      _
    // Predicated region
    $region18: #{tpu_custom_call.1} parent=1 // pred_check
      _
    $region19: #{tpu_custom_call.1} parent=1 // pred_check_branch
      %41 = sbr.rel (0) target = $region21
    $region20: #{tpu_custom_call.1} parent=1 // pred_region
      %42 = dma.done [#allocation6], 512
    $region21: #{tpu_custom_call.1} parent=1 // pred_fallthru
      _
    %v43 = vld [vmem:[#allocation2] sm:$0xff]
    %v44 = vld [vmem:[#allocation5] sm:$0xff]
    %v45 = vld [vmem:[#allocation5 + $0x8] sm:$0xff]
    %v46 = vld [vmem:[#allocation5 + $0x10] sm:$0xff]
    %v47 = vld [vmem:[#allocation5 + $0x18] sm:$0xff]
    %v48 = vld [vmem:[%s2] sm:$0x1]
    %v50 = vlaneseq
    %v51 = vshrl.u32 %v50, 7
    %v52 = vsub.s32 0, %v51
    %v53 = vrot.slane %v48, %v52
    %vm55 = vcmask 261120
    %v57 = vsel %vm55, %v43, 0
    %59 = vmatprep.subr.mxu0 0.0
    %60 = vmatpush1.msra.mxu0 0.0
    %61 = vmatprep.subr.mxu0 0.0
    %62 = vmatpush1.msra.mxu0 0.0
    %63 = vmatprep.subr.mxu0 0.0
    %64 = vmatpush1.msra.mxu0 0.0
    %65 = vmatprep.subr.mxu0 0.0
    %66 = vmatpush1.msra.mxu0 0.0
    %67 = vmatprep.subr.mxu0 0.0
    %68 = vmatpush1.msra.mxu0 0.0
    %69 = vmatprep.subr.mxu0 0.0
    %70 = vmatpush1.msra.mxu0 0.0
    %71 = vmatprep.subr.mxu0 0.0
    %72 = vmatpush1.msra.mxu0 0.0
    %73 = vmatprep.subr.mxu0 0.0
    %74 = vmatpush1.msra.mxu0 0.0
    %75 = vmatprep.subr.mxu0 0.0
    %76 = vmatpush1.msra.mxu0 0.0
    %77 = vmatprep.subr.mxu0 0.0
    %78 = vmatpush1.msra.mxu0 0.0
    %79 = vmatprep.subr.mxu0 0.0
    %80 = vmatpush1.msra.mxu0 0.0
    %81 = vmatprep.subr.mxu0 0.0
    %82 = vmatpush1.msra.mxu0 0.0
    %83 = vmatprep.subr.mxu0 0.0
    %84 = vmatpush1.msra.mxu0 %v47
    %85 = vmatprep.subr.mxu0 0.0
    %86 = vmatpush1.msra.mxu0 %v46
    %87 = vmatprep.subr.mxu0 0.0
    %88 = vmatpush1.msra.mxu0 %v45
    %89 = vmatprep.subr.mxu0 0.0
    %90 = vmatpush1.msra.mxu0 %v44
    %91 = vmatprep.subr.mxu0 0.0
    %92 = vmatpush2.msra.mxu0 0.0
    %93 = vmatprep.subr.mxu0 0.0
    %94 = vmatpush2.msra.mxu0 0.0
    %95 = vmatprep.subr.mxu0 0.0
    %96 = vmatpush2.msra.mxu0 0.0
    %97 = vmatprep.subr.mxu0 0.0
    %98 = vmatpush2.msra.mxu0 0.0
    %99 = vmatprep.subr.mxu0 0.0
    %100 = vmatpush2.msra.mxu0 0.0
    %101 = vmatprep.subr.mxu0 0.0
    %102 = vmatpush2.msra.mxu0 0.0
    %103 = vmatprep.subr.mxu0 0.0
    %104 = vmatpush2.msra.mxu0 0.0
    %105 = vmatprep.subr.mxu0 0.0
    %106 = vmatpush2.msra.mxu0 0.0
    %107 = vmatprep.subr.mxu0 0.0
    %108 = vmatpush2.msra.mxu0 0.0
    %109 = vmatprep.subr.mxu0 0.0
    %110 = vmatpush2.msra.mxu0 0.0
    %111 = vmatprep.subr.mxu0 0.0
    %112 = vmatpush2.msra.mxu0 0.0
    %113 = vmatprep.subr.mxu0 0.0
    %114 = vmatpush2.msra.mxu0 0.0
    %115 = vmatprep.subr.mxu0 0.0
    %116 = vmatpush2.msra.mxu0 0.0
    %117 = vmatprep.subr.mxu0 0.0
    %118 = vmatpush2.msra.mxu0 0.0
    %119 = vmatprep.subr.mxu0 0.0
    %120 = vmatpush2.msra.mxu0 0.0
    %121 = vmatprep.subr.mxu0 0.0
    %122 = vmatpush2.msra.mxu0 0.0
    %123 = vmatprep.mubr.f32.mxu0 0.0
    %124 = vmatmul.mubr.f32.gmra.mxu0 %v57
    %v125 = vpop.f32.mrf.mxu0
    %v126 = vadd.f32 %v53, %v125
    %v127 = vpop.f32.mrf.mxu0
    %128 = vdwg.mxu0
    %vm129 = vcmask 31744
    %130 = vst.msk [vmem:[#allocation7] sm:$0xff] %vm129, %v126
    // Predicated region
    $region22: #{tpu_custom_call.1} parent=1 // pred_check
      _
    $region23: #{tpu_custom_call.1} parent=1 // pred_check_branch
      %132 = sbr.rel (0) target = $region25
    $region24: #{tpu_custom_call.1} parent=1 // pred_region
      %s134 = ssub.s32 128, 32
      %135 = vsyncadd [#allocation4], %s134
      %s136 = sshll.u32 [#allocation7], 4
      %s137 = int_to_ptr.vmem [resolvable:$true] %s136
      %142 = dma.vmem_to_hbm [thread:$0]  %s137, 32, %s3, [#allocation4], 32, 32, 2
    $region25: #{tpu_custom_call.1} parent=1 // pred_fallthru
      _
    // Predicated region
    $region26: #{tpu_custom_call.1} parent=1 // pred_check
      _
    $region27: #{tpu_custom_call.1} parent=1 // pred_check_branch
      %144 = sbr.rel (0) target = $region29
    $region28: #{tpu_custom_call.1} parent=1 // pred_region
      %145 = dma.done [#allocation4], 128
    $region29: #{tpu_custom_call.1} parent=1 // pred_fallthru
      _
    %146 = vsyncpa [#allocation3], 1
    %147 = vsyncpa [#allocation6], 1
    %148 = vsyncpa [#allocation4], 1

</llo_original>
